<compile_context>
chip_gen: v5e
topology: v5e:2x2
jax: 0.10.0
libtpu: 0.0.40
codegen_flags: <defaults>
</compile_context>

<pallas_src>
import jax
import jax.numpy as jnp
from jax import lax
from jax.experimental import pallas as pl
from jax.experimental.pallas import tpu as pltpu

MAX_CLASSES = 8                        # static upper bound on #classes (power of 2)
LANES = 128
SUBLANES = 8
FLUSH_GROUPS = 15                      # 8-row groups per flush (4-bit fields overflow at 16)
BLOCK_ROWS = SUBLANES * FLUSH_GROUPS   # 120 rows between flushes
TM_MAX = 32 * BLOCK_ROWS               # 3840 rows -> ~1.9 MiB per int32 input block

assert MAX_CLASSES & (MAX_CLASSES - 1) == 0 and 4 * MAX_CLASSES <= 32


def _num_tensorcores():
    """Best-effort TensorCores per device (v7x/v4/v5p: 2; v5e/v6e: 1)."""
    try:
        kind = jax.devices()[0].device_kind.lower()
    except Exception:
        return 1
    for tag in ("v5 lite", "v5litepod", "v5e", "v6 lite", "v6e"):
        if tag in kind:
            return 1
    return 2


def _make_kernel(tm, tiles_per_split, m_rows, needs_mask):
    """Build the dice-sums kernel for a static tiling plan."""
    n_full_blocks = tm // BLOCK_ROWS
    tail_groups = (tm - n_full_blocks * BLOCK_ROWS) // SUBLANES
    lo_mask = MAX_CLASSES - 1          # label -> field selector (label & 7)
    hi_mask = -MAX_CLASSES             # (x & -8) == 0  <=>  0 <= x < 8

    def kernel(pred_ref, mask_ref, inter_ref, psum_ref, msum_ref):
        # Grid = (NSPLIT, tiles_per_split).
        # pred_ref/mask_ref : (tm, 128) int32 label tiles.
        # inter/psum/msum   : (MAX_CLASSES, 8, 128) int32 resident accumulators
        #                     (one block per split; written back by Pallas at the
        #                     end of the split's row-tile loop).
        j = pl.program_id(1)

        @pl.when(j == 0)
        def _init():
            inter_ref[...] = jnp.zeros_like(inter_ref)
            psum_ref[...] = jnp.zeros_like(psum_ref)
            msum_ref[...] = jnp.zeros_like(msum_ref)

        if needs_mask:
            # True (unclamped) tile id -> number of valid rows in this tile.
            t = pl.program_id(0) * tiles_per_split + j
            rem = m_rows - t * tm
            row_iota = lax.broadcasted_iota(jnp.int32, (SUBLANES, LANES), 0)
        one = jnp.ones((SUBLANES, LANES), jnp.int32)

        def do_rows(base, n_groups):
            # Packed 4-bit per-class counters, 8 sublane phases per lane.
            p_pack = jnp.zeros((SUBLANES, LANES), jnp.int32)
            m_pack = jnp.zeros((SUBLANES, LANES), jnp.int32)
            i_pack = jnp.zeros((SUBLANES, LANES), jnp.int32)
            for g in range(n_groups):              # static unroll, <= 15 groups
                r = base + g * SUBLANES
                if not isinstance(r, int):
                    r = pl.multiple_of(r, SUBLANES)
                o = pred_ref[pl.ds(r, SUBLANES), :]
                m = mask_ref[pl.ds(r, SUBLANES), :]
                ok_o = (o & hi_mask) == 0          # 0 <= label < MAX_CLASSES
                ok_m = (m & hi_mask) == 0
                if needs_mask:
                    in_rows = (row_iota + r) < rem
                    ok_o = ok_o & in_rows
                    ok_m = ok_m & in_rows
                w_o = jnp.where(
                    ok_o, jnp.left_shift(one, jnp.left_shift(o & lo_mask, 2)), 0)
                w_m = jnp.where(
                    ok_m, jnp.left_shift(one, jnp.left_shift(m & lo_mask, 2)), 0)
                w_i = jnp.where(o == m, w_o, 0)    # o==m (and o in range) => both hit class o
                p_pack = p_pack + w_o
                m_pack = m_pack + w_m
                i_pack = i_pack + w_i
            # Flush the 4-bit fields into the resident per-class accumulators
            # (full (8,128) aligned block RMWs; final sublane reduce is in the
            # wrapper on a tiny array).
            for c in range(MAX_CLASSES):
                sh = 4 * c
                inter_ref[c] += (i_pack >> sh) & 0xF
                psum_ref[c] += (p_pack >> sh) & 0xF
                msum_ref[c] += (m_pack >> sh) & 0xF

        if n_full_blocks > 0:
            @pl.loop(0, n_full_blocks)
            def _blocks(b):
                do_rows(b * BLOCK_ROWS, FLUSH_GROUPS)
        if tail_groups > 0:
            do_rows(n_full_blocks * BLOCK_ROWS, tail_groups)

    return kernel


@jax.jit
def multiclass_dice_score(output, mask):
    """Forward semantics of MultiClassDiceScore.forward(output, mask)."""
    assert output.shape[0] == 1
    assert output.shape == mask.shape

    n = output.size
    pad = (-n) % LANES

    def to_rows(x):
        flat = x.reshape(-1)
        if flat.dtype != jnp.int32:
            flat = flat.astype(jnp.int32)
        if pad:
            # TODO(synk): this small lane-alignment pad still materializes a copy;
            # only hit when the flat element count is not a multiple of 128
            # (pad value -1 matches no class id).
            flat = jnp.pad(flat, (0, pad), constant_values=-1)
        return flat.reshape(-1, LANES)

    pred2d = to_rows(output)
    mask2d = to_rows(mask)
    m_rows = pred2d.shape[0]

    # ---- static tiling plan (pure Python on static shapes) ------------------
    nsplit = _num_tensorcores()
    rows_per_split = -(-m_rows // nsplit)
    tm = min(TM_MAX, ((rows_per_split + SUBLANES - 1) // SUBLANES) * SUBLANES)
    tiles_total = -(-m_rows // tm)
    nsplit = min(nsplit, tiles_total)
    tiles_per_split = -(-tiles_total // nsplit)
    needs_mask = (nsplit * tiles_per_split * tm) != m_rows
    last_tile = tiles_total - 1

    def in_map(p, j):
        t = p * tiles_per_split + j
        if nsplit * tiles_per_split != tiles_total:
            # Overhanging grid steps re-read (and fully mask out) the last tile.
            t = jnp.minimum(t, last_tile)
        return (t, 0)

    acc_shape = jax.ShapeDtypeStruct(
        (nsplit, MAX_CLASSES, SUBLANES, LANES), jnp.int32)
    out_spec = pl.BlockSpec((None, MAX_CLASSES, SUBLANES, LANES),
                            lambda p, j: (p, 0, 0, 0))

    grid_spec = pltpu.PrefetchScalarGridSpec(
        num_scalar_prefetch=0,
        grid=(nsplit, tiles_per_split),
        in_specs=[
            pl.BlockSpec((tm, LANES), in_map),
            pl.BlockSpec((tm, LANES), in_map),
        ],
        out_specs=[out_spec, out_spec, out_spec],
    )

    inter, psum, msum = pl.pallas_call(
        _make_kernel(tm, tiles_per_split, m_rows, needs_mask),
        out_shape=(acc_shape, acc_shape, acc_shape),
        grid_spec=grid_spec,
        compiler_params=pltpu.CompilerParams(
            dimension_semantics=("parallel", "arbitrary"),
            vmem_limit_bytes=32 * 1024 * 1024,
        ),
    )(pred2d, mask2d)

    # ---- final (tiny) reductions + dice formula ------------------------------
    inter_c = inter.sum(axis=(0, 2, 3)).astype(jnp.float32)    # (MAX_CLASSES,)
    psum_c = psum.sum(axis=(0, 2, 3)).astype(jnp.float32)
    msum_i = msum.sum(axis=(0, 2, 3))                          # int32 mask histogram
    msum_c = msum_i.astype(jnp.float32)

    cls = jnp.arange(MAX_CLASSES, dtype=jnp.int32)
    # num_classes = max(mask) + 1, recovered from the mask histogram (no second
    # HBM pass over `mask`).  Labels are assumed non-negative.
    num_classes = jnp.max(jnp.where(msum_i > 0, cls + 1, 0))

    eps = jnp.float32(1e-7)
    dice = 2.0 * ((inter_c + eps) / (psum_c + msum_c + eps))   # per-class dice
    valid = (cls >= 1) & (cls < num_classes)                   # loop range 1..nc-1
    loss = jnp.sum(jnp.where(valid, dice, 0.0))
    # Note: num_classes == 1 divides by zero, same as the PyTorch reference.
    return loss / (num_classes - 1).astype(jnp.float32)


def _reference(output, mask):
    """Pure-JAX transcription of the PyTorch forward (for verification)."""
    num_classes = int(jnp.max(mask)) + 1
    loss = 0.0
    for i in range(1, num_classes):
        probs = jnp.squeeze((output == i).astype(jnp.float32))
        mask_i = jnp.squeeze((mask == i).astype(jnp.float32))
        num = jnp.sum(probs * mask_i)
        den1 = jnp.sum(probs * probs)
        den2 = jnp.sum(mask_i * mask_i)
        eps = 1e-7
        loss += 2 * ((num + eps) / (den1 + den2 + eps))
    return loss / (num_classes - 1)


if __name__ == "__main__":
    key = jax.random.PRNGKey(0)
    k1, k2 = jax.random.split(key)
    # (1, D, H, W) integer label volumes, classes 0..3
    output = jax.random.randint(k1, (1, 4, 16, 16), 0, 4, dtype=jnp.int32)
    mask = jax.random.randint(k2, (1, 4, 16, 16), 0, 4, dtype=jnp.int32)

    result = multiclass_dice_score(output, mask)
    jax.block_until_ready(result)

    ref = _reference(output, mask)
    assert abs(float(result) - float(ref)) < 1e-5, (float(result), float(ref))
    print("KERNEL_OK")
</pallas_src>

<mosaic_0001>
module attributes {stable_mosaic.version = 11 : i64} {
  func.func @kernel(%arg0: i32, %arg1: i32, %arg2: memref<8x128xi32, #tpu.memory_space<vmem>>, %arg3: memref<8x128xi32, #tpu.memory_space<vmem>>, %arg4: memref<1x8x8x128xi32, #tpu.memory_space<vmem>>, %arg5: memref<1x8x8x128xi32, #tpu.memory_space<vmem>>, %arg6: memref<1x8x8x128xi32, #tpu.memory_space<vmem>>) attributes {dimension_semantics = [#tpu.dimension_semantics<parallel>, #tpu.dimension_semantics<arbitrary>], iteration_bounds = array<i64: 1, 1>, scalar_prefetch = 0 : i64, scratch_operands = 0 : i64, tpu.core_type = #tpu.core_type<tc>, window_params = [{transform_indices = @transform_0, window_bounds = array<i64: 8, 128>}, {transform_indices = @transform_1, window_bounds = array<i64: 8, 128>}, {transform_indices = @transform_2, window_bounds = array<i64: 1, 8, 8, 128>}, {transform_indices = @transform_3, window_bounds = array<i64: 1, 8, 8, 128>}, {transform_indices = @transform_4, window_bounds = array<i64: 1, 8, 8, 128>}]} {
    %c0_i32 = arith.constant 0 : i32
    %0 = arith.cmpi eq, %arg1, %c0_i32 : i32
    %1 = arith.extui %0 : i1 to i32
    %c0_i32_0 = arith.constant 0 : i32
    %2 = arith.cmpi ne, %1, %c0_i32_0 : i32
    scf.if %2 {
      %c0_i32_240 = arith.constant 0 : i32
      %277 = vector.broadcast %c0_i32_240 : i32 to vector<8x8x128xi32>
      %c0_241 = arith.constant 0 : index
      %c0_242 = arith.constant 0 : index
      %c0_243 = arith.constant 0 : index
      %c0_244 = arith.constant 0 : index
      %278 = vector.load %arg4[%c0_241, %c0_242, %c0_243, %c0_244] : memref<1x8x8x128xi32, #tpu.memory_space<vmem>>, vector<1x8x8x128xi32>
      %279 = vector.shape_cast %278 : vector<1x8x8x128xi32> to vector<8x8x128xi32>
      %280 = vector.shape_cast %277 : vector<8x8x128xi32> to vector<1x8x8x128xi32>
      tpu.vector_store %arg4[%c0_241, %c0_242, %c0_243, %c0_244], %280 {strides = array<i32>} : memref<1x8x8x128xi32, #tpu.memory_space<vmem>>, vector<1x8x8x128xi32>,
      %c0_i32_245 = arith.constant 0 : i32
      %281 = vector.broadcast %c0_i32_245 : i32 to vector<8x8x128xi32>
      %c0_246 = arith.constant 0 : index
      %c0_247 = arith.constant 0 : index
      %c0_248 = arith.constant 0 : index
      %c0_249 = arith.constant 0 : index
      %282 = vector.load %arg5[%c0_246, %c0_247, %c0_248, %c0_249] : memref<1x8x8x128xi32, #tpu.memory_space<vmem>>, vector<1x8x8x128xi32>
      %283 = vector.shape_cast %282 : vector<1x8x8x128xi32> to vector<8x8x128xi32>
      %284 = vector.shape_cast %281 : vector<8x8x128xi32> to vector<1x8x8x128xi32>
      tpu.vector_store %arg5[%c0_246, %c0_247, %c0_248, %c0_249], %284 {strides = array<i32>} : memref<1x8x8x128xi32, #tpu.memory_space<vmem>>, vector<1x8x8x128xi32>,
      %c0_i32_250 = arith.constant 0 : i32
      %285 = vector.broadcast %c0_i32_250 : i32 to vector<8x8x128xi32>
      %c0_251 = arith.constant 0 : index
      %c0_252 = arith.constant 0 : index
      %c0_253 = arith.constant 0 : index
      %c0_254 = arith.constant 0 : index
      %286 = vector.load %arg6[%c0_251, %c0_252, %c0_253, %c0_254] : memref<1x8x8x128xi32, #tpu.memory_space<vmem>>, vector<1x8x8x128xi32>
      %287 = vector.shape_cast %286 : vector<1x8x8x128xi32> to vector<8x8x128xi32>
      %288 = vector.shape_cast %285 : vector<8x8x128xi32> to vector<1x8x8x128xi32>
      tpu.vector_store %arg6[%c0_251, %c0_252, %c0_253, %c0_254], %288 {strides = array<i32>} : memref<1x8x8x128xi32, #tpu.memory_space<vmem>>, vector<1x8x8x128xi32>,
    } else {
    }
    %c1_i32 = arith.constant 1 : i32
    %3 = vector.broadcast %c1_i32 : i32 to vector<8x128xi32>
    %c0_i32_1 = arith.constant 0 : i32
    %4 = vector.broadcast %c0_i32_1 : i32 to vector<8x128xi32>
    %c0_i32_2 = arith.constant 0 : i32
    %5 = vector.broadcast %c0_i32_2 : i32 to vector<8x128xi32>
    %c0_i32_3 = arith.constant 0 : i32
    %6 = vector.broadcast %c0_i32_3 : i32 to vector<8x128xi32>
    %c0 = arith.constant 0 : index
    %c0_4 = arith.constant 0 : index
    %7 = vector.load %arg2[%c0, %c0_4] : memref<8x128xi32, #tpu.memory_space<vmem>>, vector<8x128xi32>
    %c0_5 = arith.constant 0 : index
    %c0_6 = arith.constant 0 : index
    %8 = vector.load %arg3[%c0_5, %c0_6] : memref<8x128xi32, #tpu.memory_space<vmem>>, vector<8x128xi32>
    %c-8_i32 = arith.constant -8 : i32
    %9 = vector.broadcast %c-8_i32 : i32 to vector<8x128xi32>
    %10 = arith.andi %7, %9 : vector<8x128xi32>
    %c0_i32_7 = arith.constant 0 : i32
    %11 = vector.broadcast %c0_i32_7 : i32 to vector<8x128xi32>
    %12 = arith.cmpi eq, %10, %11 : vector<8x128xi32>
    %c-8_i32_8 = arith.constant -8 : i32
    %13 = vector.broadcast %c-8_i32_8 : i32 to vector<8x128xi32>
    %14 = arith.andi %8, %13 : vector<8x128xi32>
    %c0_i32_9 = arith.constant 0 : i32
    %15 = vector.broadcast %c0_i32_9 : i32 to vector<8x128xi32>
    %16 = arith.cmpi eq, %14, %15 : vector<8x128xi32>
    %c7_i32 = arith.constant 7 : i32
    %17 = vector.broadcast %c7_i32 : i32 to vector<8x128xi32>
    %18 = arith.andi %7, %17 : vector<8x128xi32>
    %c2_i32 = arith.constant 2 : i32
    %19 = vector.broadcast %c2_i32 : i32 to vector<8x128xi32>
    %20 = arith.shli %18, %19 : vector<8x128xi32>
    %21 = arith.shli %3, %20 : vector<8x128xi32>
    %c0_i32_10 = arith.constant 0 : i32
    %22 = vector.broadcast %c0_i32_10 : i32 to vector<8x128xi32>
    %23 = arith.select %12, %21, %22 : vector<8x128xi1>, vector<8x128xi32>
    %c7_i32_11 = arith.constant 7 : i32
    %24 = vector.broadcast %c7_i32_11 : i32 to vector<8x128xi32>
    %25 = arith.andi %8, %24 : vector<8x128xi32>
    %c2_i32_12 = arith.constant 2 : i32
    %26 = vector.broadcast %c2_i32_12 : i32 to vector<8x128xi32>
    %27 = arith.shli %25, %26 : vector<8x128xi32>
    %28 = arith.shli %3, %27 : vector<8x128xi32>
    %c0_i32_13 = arith.constant 0 : i32
    %29 = vector.broadcast %c0_i32_13 : i32 to vector<8x128xi32>
    %30 = arith.select %16, %28, %29 : vector<8x128xi1>, vector<8x128xi32>
    %31 = arith.cmpi eq, %7, %8 : vector<8x128xi32>
    %c0_i32_14 = arith.constant 0 : i32
    %32 = vector.broadcast %c0_i32_14 : i32 to vector<8x128xi32>
    %33 = arith.select %31, %23, %32 : vector<8x128xi1>, vector<8x128xi32>
    %34 = arith.addi %4, %23 : vector<8x128xi32>
    %35 = arith.addi %5, %30 : vector<8x128xi32>
    %36 = arith.addi %6, %33 : vector<8x128xi32>
    %c0_15 = arith.constant 0 : index
    %c0_16 = arith.constant 0 : index
    %c0_17 = arith.constant 0 : index
    %c0_18 = arith.constant 0 : index
    %37 = vector.load %arg4[%c0_15, %c0_16, %c0_17, %c0_18] : memref<1x8x8x128xi32, #tpu.memory_space<vmem>>, vector<1x1x8x128xi32>
    %38 = vector.shape_cast %37 : vector<1x1x8x128xi32> to vector<8x128xi32>
    %c0_i32_19 = arith.constant 0 : i32
    %39 = vector.broadcast %c0_i32_19 : i32 to vector<8x128xi32>
    %40 = arith.shrsi %36, %39 : vector<8x128xi32>
    %c15_i32 = arith.constant 15 : i32
    %41 = vector.broadcast %c15_i32 : i32 to vector<8x128xi32>
    %42 = arith.andi %40, %41 : vector<8x128xi32>
    %43 = arith.addi %38, %42 : vector<8x128xi32>
    %c0_20 = arith.constant 0 : index
    %c0_21 = arith.constant 0 : index
    %c0_22 = arith.constant 0 : index
    %c0_23 = arith.constant 0 : index
    %44 = vector.load %arg4[%c0_20, %c0_21, %c0_22, %c0_23] : memref<1x8x8x128xi32, #tpu.memory_space<vmem>>, vector<1x1x8x128xi32>
    %45 = vector.shape_cast %44 : vector<1x1x8x128xi32> to vector<8x128xi32>
    %46 = vector.shape_cast %43 : vector<8x128xi32> to vector<1x1x8x128xi32>
    tpu.vector_store %arg4[%c0_20, %c0_21, %c0_22, %c0_23], %46 {strides = array<i32>} : memref<1x8x8x128xi32, #tpu.memory_space<vmem>>, vector<1x1x8x128xi32>,
    %c0_24 = arith.constant 0 : index
    %c0_25 = arith.constant 0 : index
    %c0_26 = arith.constant 0 : index
    %c0_27 = arith.constant 0 : index
    %47 = vector.load %arg5[%c0_24, %c0_25, %c0_26, %c0_27] : memref<1x8x8x128xi32, #tpu.memory_space<vmem>>, vector<1x1x8x128xi32>
    %48 = vector.shape_cast %47 : vector<1x1x8x128xi32> to vector<8x128xi32>
    %c0_i32_28 = arith.constant 0 : i32
    %49 = vector.broadcast %c0_i32_28 : i32 to vector<8x128xi32>
    %50 = arith.shrsi %34, %49 : vector<8x128xi32>
    %c15_i32_29 = arith.constant 15 : i32
    %51 = vector.broadcast %c15_i32_29 : i32 to vector<8x128xi32>
    %52 = arith.andi %50, %51 : vector<8x128xi32>
    %53 = arith.addi %48, %52 : vector<8x128xi32>
    %c0_30 = arith.constant 0 : index
    %c0_31 = arith.constant 0 : index
    %c0_32 = arith.constant 0 : index
    %c0_33 = arith.constant 0 : index
    %54 = vector.load %arg5[%c0_30, %c0_31, %c0_32, %c0_33] : memref<1x8x8x128xi32, #tpu.memory_space<vmem>>, vector<1x1x8x128xi32>
    %55 = vector.shape_cast %54 : vector<1x1x8x128xi32> to vector<8x128xi32>
    %56 = vector.shape_cast %53 : vector<8x128xi32> to vector<1x1x8x128xi32>
    tpu.vector_store %arg5[%c0_30, %c0_31, %c0_32, %c0_33], %56 {strides = array<i32>} : memref<1x8x8x128xi32, #tpu.memory_space<vmem>>, vector<1x1x8x128xi32>,
    %c0_34 = arith.constant 0 : index
    %c0_35 = arith.constant 0 : index
    %c0_36 = arith.constant 0 : index
    %c0_37 = arith.constant 0 : index
    %57 = vector.load %arg6[%c0_34, %c0_35, %c0_36, %c0_37] : memref<1x8x8x128xi32, #tpu.memory_space<vmem>>, vector<1x1x8x128xi32>
    %58 = vector.shape_cast %57 : vector<1x1x8x128xi32> to vector<8x128xi32>
    %c0_i32_38 = arith.constant 0 : i32
    %59 = vector.broadcast %c0_i32_38 : i32 to vector<8x128xi32>
    %60 = arith.shrsi %35, %59 : vector<8x128xi32>
    %c15_i32_39 = arith.constant 15 : i32
    %61 = vector.broadcast %c15_i32_39 : i32 to vector<8x128xi32>
    %62 = arith.andi %60, %61 : vector<8x128xi32>
    %63 = arith.addi %58, %62 : vector<8x128xi32>
    %c0_40 = arith.constant 0 : index
    %c0_41 = arith.constant 0 : index
    %c0_42 = arith.constant 0 : index
    %c0_43 = arith.constant 0 : index
    %64 = vector.load %arg6[%c0_40, %c0_41, %c0_42, %c0_43] : memref<1x8x8x128xi32, #tpu.memory_space<vmem>>, vector<1x1x8x128xi32>
    %65 = vector.shape_cast %64 : vector<1x1x8x128xi32> to vector<8x128xi32>
    %66 = vector.shape_cast %63 : vector<8x128xi32> to vector<1x1x8x128xi32>
    tpu.vector_store %arg6[%c0_40, %c0_41, %c0_42, %c0_43], %66 {strides = array<i32>} : memref<1x8x8x128xi32, #tpu.memory_space<vmem>>, vector<1x1x8x128xi32>,
    %c0_44 = arith.constant 0 : index
    %c1 = arith.constant 1 : index
    %c0_45 = arith.constant 0 : index
    %c0_46 = arith.constant 0 : index
    %67 = vector.load %arg4[%c0_44, %c1, %c0_45, %c0_46] : memref<1x8x8x128xi32, #tpu.memory_space<vmem>>, vector<1x1x8x128xi32>
    %68 = vector.shape_cast %67 : vector<1x1x8x128xi32> to vector<8x128xi32>
    %c4_i32 = arith.constant 4 : i32
    %69 = vector.broadcast %c4_i32 : i32 to vector<8x128xi32>
    %70 = arith.shrsi %36, %69 : vector<8x128xi32>
    %c15_i32_47 = arith.constant 15 : i32
    %71 = vector.broadcast %c15_i32_47 : i32 to vector<8x128xi32>
    %72 = arith.andi %70, %71 : vector<8x128xi32>
    %73 = arith.addi %68, %72 : vector<8x128xi32>
    %c0_48 = arith.constant 0 : index
    %c1_49 = arith.constant 1 : index
    %c0_50 = arith.constant 0 : index
    %c0_51 = arith.constant 0 : index
    %74 = vector.load %arg4[%c0_48, %c1_49, %c0_50, %c0_51] : memref<1x8x8x128xi32, #tpu.memory_space<vmem>>, vector<1x1x8x128xi32>
    %75 = vector.shape_cast %74 : vector<1x1x8x128xi32> to vector<8x128xi32>
    %76 = vector.shape_cast %73 : vector<8x128xi32> to vector<1x1x8x128xi32>
    tpu.vector_store %arg4[%c0_48, %c1_49, %c0_50, %c0_51], %76 {strides = array<i32>} : memref<1x8x8x128xi32, #tpu.memory_space<vmem>>, vector<1x1x8x128xi32>,
    %c0_52 = arith.constant 0 : index
    %c1_53 = arith.constant 1 : index
    %c0_54 = arith.constant 0 : index
    %c0_55 = arith.constant 0 : index
    %77 = vector.load %arg5[%c0_52, %c1_53, %c0_54, %c0_55] : memref<1x8x8x128xi32, #tpu.memory_space<vmem>>, vector<1x1x8x128xi32>
    %78 = vector.shape_cast %77 : vector<1x1x8x128xi32> to vector<8x128xi32>
    %c4_i32_56 = arith.constant 4 : i32
    %79 = vector.broadcast %c4_i32_56 : i32 to vector<8x128xi32>
    %80 = arith.shrsi %34, %79 : vector<8x128xi32>
    %c15_i32_57 = arith.constant 15 : i32
    %81 = vector.broadcast %c15_i32_57 : i32 to vector<8x128xi32>
    %82 = arith.andi %80, %81 : vector<8x128xi32>
    %83 = arith.addi %78, %82 : vector<8x128xi32>
    %c0_58 = arith.constant 0 : index
    %c1_59 = arith.constant 1 : index
    %c0_60 = arith.constant 0 : index
    %c0_61 = arith.constant 0 : index
    %84 = vector.load %arg5[%c0_58, %c1_59, %c0_60, %c0_61] : memref<1x8x8x128xi32, #tpu.memory_space<vmem>>, vector<1x1x8x128xi32>
    %85 = vector.shape_cast %84 : vector<1x1x8x128xi32> to vector<8x128xi32>
    %86 = vector.shape_cast %83 : vector<8x128xi32> to vector<1x1x8x128xi32>
    tpu.vector_store %arg5[%c0_58, %c1_59, %c0_60, %c0_61], %86 {strides = array<i32>} : memref<1x8x8x128xi32, #tpu.memory_space<vmem>>, vector<1x1x8x128xi32>,
    %c0_62 = arith.constant 0 : index
    %c1_63 = arith.constant 1 : index
    %c0_64 = arith.constant 0 : index
    %c0_65 = arith.constant 0 : index
    %87 = vector.load %arg6[%c0_62, %c1_63, %c0_64, %c0_65] : memref<1x8x8x128xi32, #tpu.memory_space<vmem>>, vector<1x1x8x128xi32>
    %88 = vector.shape_cast %87 : vector<1x1x8x128xi32> to vector<8x128xi32>
    %c4_i32_66 = arith.constant 4 : i32
    %89 = vector.broadcast %c4_i32_66 : i32 to vector<8x128xi32>
    %90 = arith.shrsi %35, %89 : vector<8x128xi32>
    %c15_i32_67 = arith.constant 15 : i32
    %91 = vector.broadcast %c15_i32_67 : i32 to vector<8x128xi32>
    %92 = arith.andi %90, %91 : vector<8x128xi32>
    %93 = arith.addi %88, %92 : vector<8x128xi32>
    %c0_68 = arith.constant 0 : index
    %c1_69 = arith.constant 1 : index
    %c0_70 = arith.constant 0 : index
    %c0_71 = arith.constant 0 : index
    %94 = vector.load %arg6[%c0_68, %c1_69, %c0_70, %c0_71] : memref<1x8x8x128xi32, #tpu.memory_space<vmem>>, vector<1x1x8x128xi32>
    %95 = vector.shape_cast %94 : vector<1x1x8x128xi32> to vector<8x128xi32>
    %96 = vector.shape_cast %93 : vector<8x128xi32> to vector<1x1x8x128xi32>
    tpu.vector_store %arg6[%c0_68, %c1_69, %c0_70, %c0_71], %96 {strides = array<i32>} : memref<1x8x8x128xi32, #tpu.memory_space<vmem>>, vector<1x1x8x128xi32>,
    %c0_72 = arith.constant 0 : index
    %c2 = arith.constant 2 : index
    %c0_73 = arith.constant 0 : index
    %c0_74 = arith.constant 0 : index
    %97 = vector.load %arg4[%c0_72, %c2, %c0_73, %c0_74] : memref<1x8x8x128xi32, #tpu.memory_space<vmem>>, vector<1x1x8x128xi32>
    %98 = vector.shape_cast %97 : vector<1x1x8x128xi32> to vector<8x128xi32>
    %c8_i32 = arith.constant 8 : i32
    %99 = vector.broadcast %c8_i32 : i32 to vector<8x128xi32>
    %100 = arith.shrsi %36, %99 : vector<8x128xi32>
    %c15_i32_75 = arith.constant 15 : i32
    %101 = vector.broadcast %c15_i32_75 : i32 to vector<8x128xi32>
    %102 = arith.andi %100, %101 : vector<8x128xi32>
    %103 = arith.addi %98, %102 : vector<8x128xi32>
    %c0_76 = arith.constant 0 : index
    %c2_77 = arith.constant 2 : index
    %c0_78 = arith.constant 0 : index
    %c0_79 = arith.constant 0 : index
    %104 = vector.load %arg4[%c0_76, %c2_77, %c0_78, %c0_79] : memref<1x8x8x128xi32, #tpu.memory_space<vmem>>, vector<1x1x8x128xi32>
    %105 = vector.shape_cast %104 : vector<1x1x8x128xi32> to vector<8x128xi32>
    %106 = vector.shape_cast %103 : vector<8x128xi32> to vector<1x1x8x128xi32>
    tpu.vector_store %arg4[%c0_76, %c2_77, %c0_78, %c0_79], %106 {strides = array<i32>} : memref<1x8x8x128xi32, #tpu.memory_space<vmem>>, vector<1x1x8x128xi32>,
    %c0_80 = arith.constant 0 : index
    %c2_81 = arith.constant 2 : index
    %c0_82 = arith.constant 0 : index
    %c0_83 = arith.constant 0 : index
    %107 = vector.load %arg5[%c0_80, %c2_81, %c0_82, %c0_83] : memref<1x8x8x128xi32, #tpu.memory_space<vmem>>, vector<1x1x8x128xi32>
    %108 = vector.shape_cast %107 : vector<1x1x8x128xi32> to vector<8x128xi32>
    %c8_i32_84 = arith.constant 8 : i32
    %109 = vector.broadcast %c8_i32_84 : i32 to vector<8x128xi32>
    %110 = arith.shrsi %34, %109 : vector<8x128xi32>
    %c15_i32_85 = arith.constant 15 : i32
    %111 = vector.broadcast %c15_i32_85 : i32 to vector<8x128xi32>
    %112 = arith.andi %110, %111 : vector<8x128xi32>
    %113 = arith.addi %108, %112 : vector<8x128xi32>
    %c0_86 = arith.constant 0 : index
    %c2_87 = arith.constant 2 : index
    %c0_88 = arith.constant 0 : index
    %c0_89 = arith.constant 0 : index
    %114 = vector.load %arg5[%c0_86, %c2_87, %c0_88, %c0_89] : memref<1x8x8x128xi32, #tpu.memory_space<vmem>>, vector<1x1x8x128xi32>
    %115 = vector.shape_cast %114 : vector<1x1x8x128xi32> to vector<8x128xi32>
    %116 = vector.shape_cast %113 : vector<8x128xi32> to vector<1x1x8x128xi32>
    tpu.vector_store %arg5[%c0_86, %c2_87, %c0_88, %c0_89], %116 {strides = array<i32>} : memref<1x8x8x128xi32, #tpu.memory_space<vmem>>, vector<1x1x8x128xi32>,
    %c0_90 = arith.constant 0 : index
    %c2_91 = arith.constant 2 : index
    %c0_92 = arith.constant 0 : index
    %c0_93 = arith.constant 0 : index
    %117 = vector.load %arg6[%c0_90, %c2_91, %c0_92, %c0_93] : memref<1x8x8x128xi32, #tpu.memory_space<vmem>>, vector<1x1x8x128xi32>
    %118 = vector.shape_cast %117 : vector<1x1x8x128xi32> to vector<8x128xi32>
    %c8_i32_94 = arith.constant 8 : i32
    %119 = vector.broadcast %c8_i32_94 : i32 to vector<8x128xi32>
    %120 = arith.shrsi %35, %119 : vector<8x128xi32>
    %c15_i32_95 = arith.constant 15 : i32
    %121 = vector.broadcast %c15_i32_95 : i32 to vector<8x128xi32>
    %122 = arith.andi %120, %121 : vector<8x128xi32>
    %123 = arith.addi %118, %122 : vector<8x128xi32>
    %c0_96 = arith.constant 0 : index
    %c2_97 = arith.constant 2 : index
    %c0_98 = arith.constant 0 : index
    %c0_99 = arith.constant 0 : index
    %124 = vector.load %arg6[%c0_96, %c2_97, %c0_98, %c0_99] : memref<1x8x8x128xi32, #tpu.memory_space<vmem>>, vector<1x1x8x128xi32>
    %125 = vector.shape_cast %124 : vector<1x1x8x128xi32> to vector<8x128xi32>
    %126 = vector.shape_cast %123 : vector<8x128xi32> to vector<1x1x8x128xi32>
    tpu.vector_store %arg6[%c0_96, %c2_97, %c0_98, %c0_99], %126 {strides = array<i32>} : memref<1x8x8x128xi32, #tpu.memory_space<vmem>>, vector<1x1x8x128xi32>,
    %c0_100 = arith.constant 0 : index
    %c3 = arith.constant 3 : index
    %c0_101 = arith.constant 0 : index
    %c0_102 = arith.constant 0 : index
    %127 = vector.load %arg4[%c0_100, %c3, %c0_101, %c0_102] : memref<1x8x8x128xi32, #tpu.memory_space<vmem>>, vector<1x1x8x128xi32>
    %128 = vector.shape_cast %127 : vector<1x1x8x128xi32> to vector<8x128xi32>
    %c12_i32 = arith.constant 12 : i32
    %129 = vector.broadcast %c12_i32 : i32 to vector<8x128xi32>
    %130 = arith.shrsi %36, %129 : vector<8x128xi32>
    %c15_i32_103 = arith.constant 15 : i32
    %131 = vector.broadcast %c15_i32_103 : i32 to vector<8x128xi32>
    %132 = arith.andi %130, %131 : vector<8x128xi32>
    %133 = arith.addi %128, %132 : vector<8x128xi32>
    %c0_104 = arith.constant 0 : index
    %c3_105 = arith.constant 3 : index
    %c0_106 = arith.constant 0 : index
    %c0_107 = arith.constant 0 : index
    %134 = vector.load %arg4[%c0_104, %c3_105, %c0_106, %c0_107] : memref<1x8x8x128xi32, #tpu.memory_space<vmem>>, vector<1x1x8x128xi32>
    %135 = vector.shape_cast %134 : vector<1x1x8x128xi32> to vector<8x128xi32>
    %136 = vector.shape_cast %133 : vector<8x128xi32> to vector<1x1x8x128xi32>
    tpu.vector_store %arg4[%c0_104, %c3_105, %c0_106, %c0_107], %136 {strides = array<i32>} : memref<1x8x8x128xi32, #tpu.memory_space<vmem>>, vector<1x1x8x128xi32>,
    %c0_108 = arith.constant 0 : index
    %c3_109 = arith.constant 3 : index
    %c0_110 = arith.constant 0 : index
    %c0_111 = arith.constant 0 : index
    %137 = vector.load %arg5[%c0_108, %c3_109, %c0_110, %c0_111] : memref<1x8x8x128xi32, #tpu.memory_space<vmem>>, vector<1x1x8x128xi32>
    %138 = vector.shape_cast %137 : vector<1x1x8x128xi32> to vector<8x128xi32>
    %c12_i32_112 = arith.constant 12 : i32
    %139 = vector.broadcast %c12_i32_112 : i32 to vector<8x128xi32>
    %140 = arith.shrsi %34, %139 : vector<8x128xi32>
    %c15_i32_113 = arith.constant 15 : i32
    %141 = vector.broadcast %c15_i32_113 : i32 to vector<8x128xi32>
    %142 = arith.andi %140, %141 : vector<8x128xi32>
    %143 = arith.addi %138, %142 : vector<8x128xi32>
    %c0_114 = arith.constant 0 : index
    %c3_115 = arith.constant 3 : index
    %c0_116 = arith.constant 0 : index
    %c0_117 = arith.constant 0 : index
    %144 = vector.load %arg5[%c0_114, %c3_115, %c0_116, %c0_117] : memref<1x8x8x128xi32, #tpu.memory_space<vmem>>, vector<1x1x8x128xi32>
    %145 = vector.shape_cast %144 : vector<1x1x8x128xi32> to vector<8x128xi32>
    %146 = vector.shape_cast %143 : vector<8x128xi32> to vector<1x1x8x128xi32>
    tpu.vector_store %arg5[%c0_114, %c3_115, %c0_116, %c0_117], %146 {strides = array<i32>} : memref<1x8x8x128xi32, #tpu.memory_space<vmem>>, vector<1x1x8x128xi32>,
    %c0_118 = arith.constant 0 : index
    %c3_119 = arith.constant 3 : index
    %c0_120 = arith.constant 0 : index
    %c0_121 = arith.constant 0 : index
    %147 = vector.load %arg6[%c0_118, %c3_119, %c0_120, %c0_121] : memref<1x8x8x128xi32, #tpu.memory_space<vmem>>, vector<1x1x8x128xi32>
    %148 = vector.shape_cast %147 : vector<1x1x8x128xi32> to vector<8x128xi32>
    %c12_i32_122 = arith.constant 12 : i32
    %149 = vector.broadcast %c12_i32_122 : i32 to vector<8x128xi32>
    %150 = arith.shrsi %35, %149 : vector<8x128xi32>
    %c15_i32_123 = arith.constant 15 : i32
    %151 = vector.broadcast %c15_i32_123 : i32 to vector<8x128xi32>
    %152 = arith.andi %150, %151 : vector<8x128xi32>
    %153 = arith.addi %148, %152 : vector<8x128xi32>
    %c0_124 = arith.constant 0 : index
    %c3_125 = arith.constant 3 : index
    %c0_126 = arith.constant 0 : index
    %c0_127 = arith.constant 0 : index
    %154 = vector.load %arg6[%c0_124, %c3_125, %c0_126, %c0_127] : memref<1x8x8x128xi32, #tpu.memory_space<vmem>>, vector<1x1x8x128xi32>
    %155 = vector.shape_cast %154 : vector<1x1x8x128xi32> to vector<8x128xi32>
    %156 = vector.shape_cast %153 : vector<8x128xi32> to vector<1x1x8x128xi32>
    tpu.vector_store %arg6[%c0_124, %c3_125, %c0_126, %c0_127], %156 {strides = array<i32>} : memref<1x8x8x128xi32, #tpu.memory_space<vmem>>, vector<1x1x8x128xi32>,
    %c0_128 = arith.constant 0 : index
    %c4 = arith.constant 4 : index
    %c0_129 = arith.constant 0 : index
    %c0_130 = arith.constant 0 : index
    %157 = vector.load %arg4[%c0_128, %c4, %c0_129, %c0_130] : memref<1x8x8x128xi32, #tpu.memory_space<vmem>>, vector<1x1x8x128xi32>
    %158 = vector.shape_cast %157 : vector<1x1x8x128xi32> to vector<8x128xi32>
    %c16_i32 = arith.constant 16 : i32
    %159 = vector.broadcast %c16_i32 : i32 to vector<8x128xi32>
    %160 = arith.shrsi %36, %159 : vector<8x128xi32>
    %c15_i32_131 = arith.constant 15 : i32
    %161 = vector.broadcast %c15_i32_131 : i32 to vector<8x128xi32>
    %162 = arith.andi %160, %161 : vector<8x128xi32>
    %163 = arith.addi %158, %162 : vector<8x128xi32>
    %c0_132 = arith.constant 0 : index
    %c4_133 = arith.constant 4 : index
    %c0_134 = arith.constant 0 : index
    %c0_135 = arith.constant 0 : index
    %164 = vector.load %arg4[%c0_132, %c4_133, %c0_134, %c0_135] : memref<1x8x8x128xi32, #tpu.memory_space<vmem>>, vector<1x1x8x128xi32>
    %165 = vector.shape_cast %164 : vector<1x1x8x128xi32> to vector<8x128xi32>
    %166 = vector.shape_cast %163 : vector<8x128xi32> to vector<1x1x8x128xi32>
    tpu.vector_store %arg4[%c0_132, %c4_133, %c0_134, %c0_135], %166 {strides = array<i32>} : memref<1x8x8x128xi32, #tpu.memory_space<vmem>>, vector<1x1x8x128xi32>,
    %c0_136 = arith.constant 0 : index
    %c4_137 = arith.constant 4 : index
    %c0_138 = arith.constant 0 : index
    %c0_139 = arith.constant 0 : index
    %167 = vector.load %arg5[%c0_136, %c4_137, %c0_138, %c0_139] : memref<1x8x8x128xi32, #tpu.memory_space<vmem>>, vector<1x1x8x128xi32>
    %168 = vector.shape_cast %167 : vector<1x1x8x128xi32> to vector<8x128xi32>
    %c16_i32_140 = arith.constant 16 : i32
    %169 = vector.broadcast %c16_i32_140 : i32 to vector<8x128xi32>
    %170 = arith.shrsi %34, %169 : vector<8x128xi32>
    %c15_i32_141 = arith.constant 15 : i32
    %171 = vector.broadcast %c15_i32_141 : i32 to vector<8x128xi32>
    %172 = arith.andi %170, %171 : vector<8x128xi32>
    %173 = arith.addi %168, %172 : vector<8x128xi32>
    %c0_142 = arith.constant 0 : index
    %c4_143 = arith.constant 4 : index
    %c0_144 = arith.constant 0 : index
    %c0_145 = arith.constant 0 : index
    %174 = vector.load %arg5[%c0_142, %c4_143, %c0_144, %c0_145] : memref<1x8x8x128xi32, #tpu.memory_space<vmem>>, vector<1x1x8x128xi32>
    %175 = vector.shape_cast %174 : vector<1x1x8x128xi32> to vector<8x128xi32>
    %176 = vector.shape_cast %173 : vector<8x128xi32> to vector<1x1x8x128xi32>
    tpu.vector_store %arg5[%c0_142, %c4_143, %c0_144, %c0_145], %176 {strides = array<i32>} : memref<1x8x8x128xi32, #tpu.memory_space<vmem>>, vector<1x1x8x128xi32>,
    %c0_146 = arith.constant 0 : index
    %c4_147 = arith.constant 4 : index
    %c0_148 = arith.constant 0 : index
    %c0_149 = arith.constant 0 : index
    %177 = vector.load %arg6[%c0_146, %c4_147, %c0_148, %c0_149] : memref<1x8x8x128xi32, #tpu.memory_space<vmem>>, vector<1x1x8x128xi32>
    %178 = vector.shape_cast %177 : vector<1x1x8x128xi32> to vector<8x128xi32>
    %c16_i32_150 = arith.constant 16 : i32
    %179 = vector.broadcast %c16_i32_150 : i32 to vector<8x128xi32>
    %180 = arith.shrsi %35, %179 : vector<8x128xi32>
    %c15_i32_151 = arith.constant 15 : i32
    %181 = vector.broadcast %c15_i32_151 : i32 to vector<8x128xi32>
    %182 = arith.andi %180, %181 : vector<8x128xi32>
    %183 = arith.addi %178, %182 : vector<8x128xi32>
    %c0_152 = arith.constant 0 : index
    %c4_153 = arith.constant 4 : index
    %c0_154 = arith.constant 0 : index
    %c0_155 = arith.constant 0 : index
    %184 = vector.load %arg6[%c0_152, %c4_153, %c0_154, %c0_155] : memref<1x8x8x128xi32, #tpu.memory_space<vmem>>, vector<1x1x8x128xi32>
    %185 = vector.shape_cast %184 : vector<1x1x8x128xi32> to vector<8x128xi32>
    %186 = vector.shape_cast %183 : vector<8x128xi32> to vector<1x1x8x128xi32>
    tpu.vector_store %arg6[%c0_152, %c4_153, %c0_154, %c0_155], %186 {strides = array<i32>} : memref<1x8x8x128xi32, #tpu.memory_space<vmem>>, vector<1x1x8x128xi32>,
    %c0_156 = arith.constant 0 : index
    %c5 = arith.constant 5 : index
    %c0_157 = arith.constant 0 : index
    %c0_158 = arith.constant 0 : index
    %187 = vector.load %arg4[%c0_156, %c5, %c0_157, %c0_158] : memref<1x8x8x128xi32, #tpu.memory_space<vmem>>, vector<1x1x8x128xi32>
    %188 = vector.shape_cast %187 : vector<1x1x8x128xi32> to vector<8x128xi32>
    %c20_i32 = arith.constant 20 : i32
    %189 = vector.broadcast %c20_i32 : i32 to vector<8x128xi32>
    %190 = arith.shrsi %36, %189 : vector<8x128xi32>
    %c15_i32_159 = arith.constant 15 : i32
    %191 = vector.broadcast %c15_i32_159 : i32 to vector<8x128xi32>
    %192 = arith.andi %190, %191 : vector<8x128xi32>
    %193 = arith.addi %188, %192 : vector<8x128xi32>
    %c0_160 = arith.constant 0 : index
    %c5_161 = arith.constant 5 : index
    %c0_162 = arith.constant 0 : index
    %c0_163 = arith.constant 0 : index
    %194 = vector.load %arg4[%c0_160, %c5_161, %c0_162, %c0_163] : memref<1x8x8x128xi32, #tpu.memory_space<vmem>>, vector<1x1x8x128xi32>
    %195 = vector.shape_cast %194 : vector<1x1x8x128xi32> to vector<8x128xi32>
    %196 = vector.shape_cast %193 : vector<8x128xi32> to vector<1x1x8x128xi32>
    tpu.vector_store %arg4[%c0_160, %c5_161, %c0_162, %c0_163], %196 {strides = array<i32>} : memref<1x8x8x128xi32, #tpu.memory_space<vmem>>, vector<1x1x8x128xi32>,
    %c0_164 = arith.constant 0 : index
    %c5_165 = arith.constant 5 : index
    %c0_166 = arith.constant 0 : index
    %c0_167 = arith.constant 0 : index
    %197 = vector.load %arg5[%c0_164, %c5_165, %c0_166, %c0_167] : memref<1x8x8x128xi32, #tpu.memory_space<vmem>>, vector<1x1x8x128xi32>
    %198 = vector.shape_cast %197 : vector<1x1x8x128xi32> to vector<8x128xi32>
    %c20_i32_168 = arith.constant 20 : i32
    %199 = vector.broadcast %c20_i32_168 : i32 to vector<8x128xi32>
    %200 = arith.shrsi %34, %199 : vector<8x128xi32>
    %c15_i32_169 = arith.constant 15 : i32
    %201 = vector.broadcast %c15_i32_169 : i32 to vector<8x128xi32>
    %202 = arith.andi %200, %201 : vector<8x128xi32>
    %203 = arith.addi %198, %202 : vector<8x128xi32>
    %c0_170 = arith.constant 0 : index
    %c5_171 = arith.constant 5 : index
    %c0_172 = arith.constant 0 : index
    %c0_173 = arith.constant 0 : index
    %204 = vector.load %arg5[%c0_170, %c5_171, %c0_172, %c0_173] : memref<1x8x8x128xi32, #tpu.memory_space<vmem>>, vector<1x1x8x128xi32>
    %205 = vector.shape_cast %204 : vector<1x1x8x128xi32> to vector<8x128xi32>
    %206 = vector.shape_cast %203 : vector<8x128xi32> to vector<1x1x8x128xi32>
    tpu.vector_store %arg5[%c0_170, %c5_171, %c0_172, %c0_173], %206 {strides = array<i32>} : memref<1x8x8x128xi32, #tpu.memory_space<vmem>>, vector<1x1x8x128xi32>,
    %c0_174 = arith.constant 0 : index
    %c5_175 = arith.constant 5 : index
    %c0_176 = arith.constant 0 : index
    %c0_177 = arith.constant 0 : index
    %207 = vector.load %arg6[%c0_174, %c5_175, %c0_176, %c0_177] : memref<1x8x8x128xi32, #tpu.memory_space<vmem>>, vector<1x1x8x128xi32>
    %208 = vector.shape_cast %207 : vector<1x1x8x128xi32> to vector<8x128xi32>
    %c20_i32_178 = arith.constant 20 : i32
    %209 = vector.broadcast %c20_i32_178 : i32 to vector<8x128xi32>
    %210 = arith.shrsi %35, %209 : vector<8x128xi32>
    %c15_i32_179 = arith.constant 15 : i32
    %211 = vector.broadcast %c15_i32_179 : i32 to vector<8x128xi32>
    %212 = arith.andi %210, %211 : vector<8x128xi32>
    %213 = arith.addi %208, %212 : vector<8x128xi32>
    %c0_180 = arith.constant 0 : index
    %c5_181 = arith.constant 5 : index
    %c0_182 = arith.constant 0 : index
    %c0_183 = arith.constant 0 : index
    %214 = vector.load %arg6[%c0_180, %c5_181, %c0_182, %c0_183] : memref<1x8x8x128xi32, #tpu.memory_space<vmem>>, vector<1x1x8x128xi32>
    %215 = vector.shape_cast %214 : vector<1x1x8x128xi32> to vector<8x128xi32>
    %216 = vector.shape_cast %213 : vector<8x128xi32> to vector<1x1x8x128xi32>
    tpu.vector_store %arg6[%c0_180, %c5_181, %c0_182, %c0_183], %216 {strides = array<i32>} : memref<1x8x8x128xi32, #tpu.memory_space<vmem>>, vector<1x1x8x128xi32>,
    %c0_184 = arith.constant 0 : index
    %c6 = arith.constant 6 : index
    %c0_185 = arith.constant 0 : index
    %c0_186 = arith.constant 0 : index
    %217 = vector.load %arg4[%c0_184, %c6, %c0_185, %c0_186] : memref<1x8x8x128xi32, #tpu.memory_space<vmem>>, vector<1x1x8x128xi32>
    %218 = vector.shape_cast %217 : vector<1x1x8x128xi32> to vector<8x128xi32>
    %c24_i32 = arith.constant 24 : i32
    %219 = vector.broadcast %c24_i32 : i32 to vector<8x128xi32>
    %220 = arith.shrsi %36, %219 : vector<8x128xi32>
    %c15_i32_187 = arith.constant 15 : i32
    %221 = vector.broadcast %c15_i32_187 : i32 to vector<8x128xi32>
    %222 = arith.andi %220, %221 : vector<8x128xi32>
    %223 = arith.addi %218, %222 : vector<8x128xi32>
    %c0_188 = arith.constant 0 : index
    %c6_189 = arith.constant 6 : index
    %c0_190 = arith.constant 0 : index
    %c0_191 = arith.constant 0 : index
    %224 = vector.load %arg4[%c0_188, %c6_189, %c0_190, %c0_191] : memref<1x8x8x128xi32, #tpu.memory_space<vmem>>, vector<1x1x8x128xi32>
    %225 = vector.shape_cast %224 : vector<1x1x8x128xi32> to vector<8x128xi32>
    %226 = vector.shape_cast %223 : vector<8x128xi32> to vector<1x1x8x128xi32>
    tpu.vector_store %arg4[%c0_188, %c6_189, %c0_190, %c0_191], %226 {strides = array<i32>} : memref<1x8x8x128xi32, #tpu.memory_space<vmem>>, vector<1x1x8x128xi32>,
    %c0_192 = arith.constant 0 : index
    %c6_193 = arith.constant 6 : index
    %c0_194 = arith.constant 0 : index
    %c0_195 = arith.constant 0 : index
    %227 = vector.load %arg5[%c0_192, %c6_193, %c0_194, %c0_195] : memref<1x8x8x128xi32, #tpu.memory_space<vmem>>, vector<1x1x8x128xi32>
    %228 = vector.shape_cast %227 : vector<1x1x8x128xi32> to vector<8x128xi32>
    %c24_i32_196 = arith.constant 24 : i32
    %229 = vector.broadcast %c24_i32_196 : i32 to vector<8x128xi32>
    %230 = arith.shrsi %34, %229 : vector<8x128xi32>
    %c15_i32_197 = arith.constant 15 : i32
    %231 = vector.broadcast %c15_i32_197 : i32 to vector<8x128xi32>
    %232 = arith.andi %230, %231 : vector<8x128xi32>
    %233 = arith.addi %228, %232 : vector<8x128xi32>
    %c0_198 = arith.constant 0 : index
    %c6_199 = arith.constant 6 : index
    %c0_200 = arith.constant 0 : index
    %c0_201 = arith.constant 0 : index
    %234 = vector.load %arg5[%c0_198, %c6_199, %c0_200, %c0_201] : memref<1x8x8x128xi32, #tpu.memory_space<vmem>>, vector<1x1x8x128xi32>
    %235 = vector.shape_cast %234 : vector<1x1x8x128xi32> to vector<8x128xi32>
    %236 = vector.shape_cast %233 : vector<8x128xi32> to vector<1x1x8x128xi32>
    tpu.vector_store %arg5[%c0_198, %c6_199, %c0_200, %c0_201], %236 {strides = array<i32>} : memref<1x8x8x128xi32, #tpu.memory_space<vmem>>, vector<1x1x8x128xi32>,
    %c0_202 = arith.constant 0 : index
    %c6_203 = arith.constant 6 : index
    %c0_204 = arith.constant 0 : index
    %c0_205 = arith.constant 0 : index
    %237 = vector.load %arg6[%c0_202, %c6_203, %c0_204, %c0_205] : memref<1x8x8x128xi32, #tpu.memory_space<vmem>>, vector<1x1x8x128xi32>
    %238 = vector.shape_cast %237 : vector<1x1x8x128xi32> to vector<8x128xi32>
    %c24_i32_206 = arith.constant 24 : i32
    %239 = vector.broadcast %c24_i32_206 : i32 to vector<8x128xi32>
    %240 = arith.shrsi %35, %239 : vector<8x128xi32>
    %c15_i32_207 = arith.constant 15 : i32
    %241 = vector.broadcast %c15_i32_207 : i32 to vector<8x128xi32>
    %242 = arith.andi %240, %241 : vector<8x128xi32>
    %243 = arith.addi %238, %242 : vector<8x128xi32>
    %c0_208 = arith.constant 0 : index
    %c6_209 = arith.constant 6 : index
    %c0_210 = arith.constant 0 : index
    %c0_211 = arith.constant 0 : index
    %244 = vector.load %arg6[%c0_208, %c6_209, %c0_210, %c0_211] : memref<1x8x8x128xi32, #tpu.memory_space<vmem>>, vector<1x1x8x128xi32>
    %245 = vector.shape_cast %244 : vector<1x1x8x128xi32> to vector<8x128xi32>
    %246 = vector.shape_cast %243 : vector<8x128xi32> to vector<1x1x8x128xi32>
    tpu.vector_store %arg6[%c0_208, %c6_209, %c0_210, %c0_211], %246 {strides = array<i32>} : memref<1x8x8x128xi32, #tpu.memory_space<vmem>>, vector<1x1x8x128xi32>,
    %c0_212 = arith.constant 0 : index
    %c7 = arith.constant 7 : index
    %c0_213 = arith.constant 0 : index
    %c0_214 = arith.constant 0 : index
    %247 = vector.load %arg4[%c0_212, %c7, %c0_213, %c0_214] : memref<1x8x8x128xi32, #tpu.memory_space<vmem>>, vector<1x1x8x128xi32>
    %248 = vector.shape_cast %247 : vector<1x1x8x128xi32> to vector<8x128xi32>
    %c28_i32 = arith.constant 28 : i32
    %249 = vector.broadcast %c28_i32 : i32 to vector<8x128xi32>
    %250 = arith.shrsi %36, %249 : vector<8x128xi32>
    %c15_i32_215 = arith.constant 15 : i32
    %251 = vector.broadcast %c15_i32_215 : i32 to vector<8x128xi32>
    %252 = arith.andi %250, %251 : vector<8x128xi32>
    %253 = arith.addi %248, %252 : vector<8x128xi32>
    %c0_216 = arith.constant 0 : index
    %c7_217 = arith.constant 7 : index
    %c0_218 = arith.constant 0 : index
    %c0_219 = arith.constant 0 : index
    %254 = vector.load %arg4[%c0_216, %c7_217, %c0_218, %c0_219] : memref<1x8x8x128xi32, #tpu.memory_space<vmem>>, vector<1x1x8x128xi32>
    %255 = vector.shape_cast %254 : vector<1x1x8x128xi32> to vector<8x128xi32>
    %256 = vector.shape_cast %253 : vector<8x128xi32> to vector<1x1x8x128xi32>
    tpu.vector_store %arg4[%c0_216, %c7_217, %c0_218, %c0_219], %256 {strides = array<i32>} : memref<1x8x8x128xi32, #tpu.memory_space<vmem>>, vector<1x1x8x128xi32>,
    %c0_220 = arith.constant 0 : index
    %c7_221 = arith.constant 7 : index
    %c0_222 = arith.constant 0 : index
    %c0_223 = arith.constant 0 : index
    %257 = vector.load %arg5[%c0_220, %c7_221, %c0_222, %c0_223] : memref<1x8x8x128xi32, #tpu.memory_space<vmem>>, vector<1x1x8x128xi32>
    %258 = vector.shape_cast %257 : vector<1x1x8x128xi32> to vector<8x128xi32>
    %c28_i32_224 = arith.constant 28 : i32
    %259 = vector.broadcast %c28_i32_224 : i32 to vector<8x128xi32>
    %260 = arith.shrsi %34, %259 : vector<8x128xi32>
    %c15_i32_225 = arith.constant 15 : i32
    %261 = vector.broadcast %c15_i32_225 : i32 to vector<8x128xi32>
    %262 = arith.andi %260, %261 : vector<8x128xi32>
    %263 = arith.addi %258, %262 : vector<8x128xi32>
    %c0_226 = arith.constant 0 : index
    %c7_227 = arith.constant 7 : index
    %c0_228 = arith.constant 0 : index
    %c0_229 = arith.constant 0 : index
    %264 = vector.load %arg5[%c0_226, %c7_227, %c0_228, %c0_229] : memref<1x8x8x128xi32, #tpu.memory_space<vmem>>, vector<1x1x8x128xi32>
    %265 = vector.shape_cast %264 : vector<1x1x8x128xi32> to vector<8x128xi32>
    %266 = vector.shape_cast %263 : vector<8x128xi32> to vector<1x1x8x128xi32>
    tpu.vector_store %arg5[%c0_226, %c7_227, %c0_228, %c0_229], %266 {strides = array<i32>} : memref<1x8x8x128xi32, #tpu.memory_space<vmem>>, vector<1x1x8x128xi32>,
    %c0_230 = arith.constant 0 : index
    %c7_231 = arith.constant 7 : index
    %c0_232 = arith.constant 0 : index
    %c0_233 = arith.constant 0 : index
    %267 = vector.load %arg6[%c0_230, %c7_231, %c0_232, %c0_233] : memref<1x8x8x128xi32, #tpu.memory_space<vmem>>, vector<1x1x8x128xi32>
    %268 = vector.shape_cast %267 : vector<1x1x8x128xi32> to vector<8x128xi32>
    %c28_i32_234 = arith.constant 28 : i32
    %269 = vector.broadcast %c28_i32_234 : i32 to vector<8x128xi32>
    %270 = arith.shrsi %35, %269 : vector<8x128xi32>
    %c15_i32_235 = arith.constant 15 : i32
    %271 = vector.broadcast %c15_i32_235 : i32 to vector<8x128xi32>
    %272 = arith.andi %270, %271 : vector<8x128xi32>
    %273 = arith.addi %268, %272 : vector<8x128xi32>
    %c0_236 = arith.constant 0 : index
    %c7_237 = arith.constant 7 : index
    %c0_238 = arith.constant 0 : index
    %c0_239 = arith.constant 0 : index
    %274 = vector.load %arg6[%c0_236, %c7_237, %c0_238, %c0_239] : memref<1x8x8x128xi32, #tpu.memory_space<vmem>>, vector<1x1x8x128xi32>
    %275 = vector.shape_cast %274 : vector<1x1x8x128xi32> to vector<8x128xi32>
    %276 = vector.shape_cast %273 : vector<8x128xi32> to vector<1x1x8x128xi32>
    tpu.vector_store %arg6[%c0_236, %c7_237, %c0_238, %c0_239], %276 {strides = array<i32>} : memref<1x8x8x128xi32, #tpu.memory_space<vmem>>, vector<1x1x8x128xi32>,
    return
  }
  func.func @transform_0(%arg0: i32, %arg1: i32) -> (i32, i32) {
    %c1_i32 = arith.constant 1 : i32
    %0 = arith.muli %arg0, %c1_i32 : i32
    %1 = arith.addi %0, %arg1 : i32
    %c0_i32 = arith.constant 0 : i32
    %c0_i32_0 = arith.constant 0 : i32
    return %1, %c0_i32 : i32, i32
  }
  func.func @transform_1(%arg0: i32, %arg1: i32) -> (i32, i32) {
    %c1_i32 = arith.constant 1 : i32
    %0 = arith.muli %arg0, %c1_i32 : i32
    %1 = arith.addi %0, %arg1 : i32
    %c0_i32 = arith.constant 0 : i32
    %c0_i32_0 = arith.constant 0 : i32
    return %1, %c0_i32 : i32, i32
  }
  func.func @transform_2(%arg0: i32, %arg1: i32) -> (i32, i32, i32, i32) {
    %c0_i32 = arith.constant 0 : i32
    %c0_i32_0 = arith.constant 0 : i32
    %c0_i32_1 = arith.constant 0 : i32
    %c0_i32_2 = arith.constant 0 : i32
    return %arg0, %c0_i32, %c0_i32_0, %c0_i32_1 : i32, i32, i32, i32
  }
  func.func @transform_3(%arg0: i32, %arg1: i32) -> (i32, i32, i32, i32) {
    %c0_i32 = arith.constant 0 : i32
    %c0_i32_0 = arith.constant 0 : i32
    %c0_i32_1 = arith.constant 0 : i32
    %c0_i32_2 = arith.constant 0 : i32
    return %arg0, %c0_i32, %c0_i32_0, %c0_i32_1 : i32, i32, i32, i32
  }
  func.func @transform_4(%arg0: i32, %arg1: i32) -> (i32, i32, i32, i32) {
    %c0_i32 = arith.constant 0 : i32
    %c0_i32_0 = arith.constant 0 : i32
    %c0_i32_1 = arith.constant 0 : i32
    %c0_i32_2 = arith.constant 0 : i32
    return %arg0, %c0_i32, %c0_i32_0, %c0_i32_1 : i32, i32, i32, i32
  }
}

</mosaic_0001>

<llo_original>
// kernel: multiclass_dice_score.1
$region0: #{multiclass_dice_score.1}
  #allocation0 [shape = 'u32[]', space=smem, size = 0x4, offset = 0x4, fixed_abs, tag = 'smem constant byte address 0x4 - core index']
  #allocation1 [shape = 'u32[72,128]{1,0:T(1,128)}', space=vmem, size = 0x9000, scoped, tag = 'internal scratch']
  %s0 = inlined_call_operand.vmem [shape: s32[8,128], index: 0, kind: input, shape index: {}]
  %s1 = inlined_call_operand.vmem [shape: s32[8,128], index: 1, kind: input, shape index: {}]
  %s2 = inlined_call_operand.vmem [shape: s32[1,8,8,128], index: 2, kind: output, shape index: {0}]
  %s3 = inlined_call_operand.vmem [shape: s32[1,8,8,128], index: 3, kind: output, shape index: {1}]
  %s4 = inlined_call_operand.vmem [shape: s32[1,8,8,128], index: 4, kind: output, shape index: {2}]
  %5 = xla_tuple %s2, %s3, %s4
  %s6 = sld [smem:[#allocation0]]
  $region38: #{multiclass_dice_score.1} parent=0
    _
  %s8 = ssub.s32 1, %s6
  %s9 = scalar_select 0, %s8, %s6
  // Predicated region
  $region2: #{multiclass_dice_score.1} parent=0 // pred_check
    _
  $region3: #{multiclass_dice_score.1} parent=0 // pred_check_branch
    %11 = sbr.rel (0) target = $region5
  $region4: #{multiclass_dice_score.1} parent=0 // pred_region
    %s12 = sadd.s32 0, 0
    %p13 = scmp.lt.s32.totalorder %s12, 0
    %s14 = scalar_select %p13, %s12, 0
    %s15 = smul.addr %s14, 8
    %s16 = scalar_lea.vmem %s0, %s15
    %s17 = sadd.s32 0, 0
  $region5: #{multiclass_dice_score.1} parent=0 // pred_fallthru
    _
  // Predicated region
  $region6: #{multiclass_dice_score.1} parent=0 // pred_check
    _
  $region7: #{multiclass_dice_score.1} parent=0 // pred_check_branch
    %19 = sbr.rel (0) target = $region9
  $region8: #{multiclass_dice_score.1} parent=0 // pred_region
    %s20 = sadd.s32 0, 0
    %p21 = scmp.lt.s32.totalorder %s20, 0
    %s22 = scalar_select %p21, %s20, 0
    %s23 = smul.addr %s22, 8
    %s24 = scalar_lea.vmem %s1, %s23
    %s25 = sadd.s32 0, 0
  $region9: #{multiclass_dice_score.1} parent=0 // pred_fallthru
    _
  %s26 = sadd.s32 0, 0
  %p27 = scmp.lt.s32.totalorder %s26, 0
  %s28 = scalar_select %p27, %s26, 0
  %s29 = smul.addr %s28, 8
  %s30 = scalar_lea.vmem %s0, %s29
  %s31 = sadd.s32 0, 0
  %p32 = scmp.lt.s32.totalorder %s31, 0
  %s33 = scalar_select %p32, %s31, 0
  %s34 = smul.addr %s33, 8
  %s35 = scalar_lea.vmem %s1, %s34
  %s36 = sadd.s32 0, 0
  %p37 = scmp.lt.s32.totalorder %s36, 0
  %s38 = scalar_select %p37, %s36, 0
  %s39 = smul.addr %s38, 8
  %s40 = scalar_lea.vmem %s0, %s39
  %s41 = sadd.s32 0, 0
  %s42 = sadd.s32 0, 0
  %p43 = scmp.lt.s32.totalorder %s42, 0
  %s44 = scalar_select %p43, %s42, 0
  %s45 = smul.addr %s44, 8
  %s46 = scalar_lea.vmem %s1, %s45
  %s47 = sadd.s32 0, 0
  %p48 = scmp.eq.s32.totalorder 0, 0
  // Predicated region
  $region10: #{multiclass_dice_score.1} parent=0 // pred_check
    %p49 = pneg %p48
  $region11: #{multiclass_dice_score.1} parent=0 // pred_check_branch
    %51 = sbr.rel (%p49) target = $region13
  $region12: #{multiclass_dice_score.1} parent=0 // pred_region
    %52 = vst [vmem:[%s2] sm:$0xff] 0
    %53 = vst [vmem:[%s2 + $0x8] sm:$0xff] 0
    %54 = vst [vmem:[%s2 + $0x10] sm:$0xff] 0
    %55 = vst [vmem:[%s2 + $0x18] sm:$0xff] 0
    %56 = vst [vmem:[%s2 + $0x20] sm:$0xff] 0
    %57 = vst [vmem:[%s2 + $0x28] sm:$0xff] 0
    %58 = vst [vmem:[%s2 + $0x30] sm:$0xff] 0
    %59 = vst [vmem:[%s2 + $0x38] sm:$0xff] 0
    %60 = vst [vmem:[%s3] sm:$0xff] 0
    %61 = vst [vmem:[%s3 + $0x8] sm:$0xff] 0
    %62 = vst [vmem:[%s3 + $0x10] sm:$0xff] 0
    %63 = vst [vmem:[%s3 + $0x18] sm:$0xff] 0
    %64 = vst [vmem:[%s3 + $0x20] sm:$0xff] 0
    %65 = vst [vmem:[%s3 + $0x28] sm:$0xff] 0
    %66 = vst [vmem:[%s3 + $0x30] sm:$0xff] 0
    %67 = vst [vmem:[%s3 + $0x38] sm:$0xff] 0
    %68 = vst [vmem:[%s4] sm:$0xff] 0
    %69 = vst [vmem:[%s4 + $0x8] sm:$0xff] 0
    %70 = vst [vmem:[%s4 + $0x10] sm:$0xff] 0
    %71 = vst [vmem:[%s4 + $0x18] sm:$0xff] 0
    %72 = vst [vmem:[%s4 + $0x20] sm:$0xff] 0
    %73 = vst [vmem:[%s4 + $0x28] sm:$0xff] 0
    %74 = vst [vmem:[%s4 + $0x30] sm:$0xff] 0
    %75 = vst [vmem:[%s4 + $0x38] sm:$0xff] 0
  $region13: #{multiclass_dice_score.1} parent=0 // pred_fallthru
    _
  %v76 = vld [vmem:[%s40] sm:$0xff]
  %v77 = vld [vmem:[%s46] sm:$0xff]
  %v78 = vand.u32 %v76, 4294967288
  %vm79 = vcmp.eq.s32.totalorder %v78, 0
  %v80 = vand.u32 %v77, 4294967288
  %vm81 = vcmp.eq.s32.totalorder %v80, 0
  %v82 = vand.u32 %v76, 7
  %v83 = vshll.u32 %v82, 2
  %v84 = vshll.u32 1, %v83
  %v85 = vsel %vm79, %v84, 0
  %v86 = vand.u32 %v77, 7
  %v87 = vshll.u32 %v86, 2
  %v88 = vshll.u32 1, %v87
  %v89 = vsel %vm81, %v88, 0
  %vm90 = vcmp.eq.s32.totalorder %v76, %v77
  %v91 = vsel %vm90, %v85, 0
  %v92 = vld [vmem:[%s2] sm:$0xff]
  %v93 = vand.u32 %v91, 15
  %v94 = vadd.s32 %v92, %v93
  %95 = vst [vmem:[%s2] sm:$0xff] %v94
  %v96 = vld [vmem:[%s3] sm:$0xff]
  %v97 = vand.u32 %v85, 15
  %v98 = vadd.s32 %v96, %v97
  %99 = vst [vmem:[%s3] sm:$0xff] %v98
  %v100 = vld [vmem:[%s4] sm:$0xff]
  %v101 = vand.u32 %v89, 15
  %v102 = vadd.s32 %v100, %v101
  %103 = vst [vmem:[%s4] sm:$0xff] %v102
  %s104 = scalar_lea.vmem %s2, 8
  %v105 = vld [vmem:[%s104] sm:$0xff]
  %v106 = vshra.s32 %v91, 4
  %v107 = vand.u32 %v106, 15
  %v108 = vadd.s32 %v105, %v107
  %109 = vst [vmem:[%s104] sm:$0xff] %v108
  %s110 = scalar_lea.vmem %s3, 8
  %v111 = vld [vmem:[%s110] sm:$0xff]
  %v112 = vshra.s32 %v85, 4
  %v113 = vand.u32 %v112, 15
  %v114 = vadd.s32 %v111, %v113
  %115 = vst [vmem:[%s110] sm:$0xff] %v114
  %s116 = scalar_lea.vmem %s4, 8
  %v117 = vld [vmem:[%s116] sm:$0xff]
  %v118 = vshra.s32 %v89, 4
  %v119 = vand.u32 %v118, 15
  %v120 = vadd.s32 %v117, %v119
  %121 = vst [vmem:[%s116] sm:$0xff] %v120
  %s122 = scalar_lea.vmem %s2, 16
  %v123 = vld [vmem:[%s122] sm:$0xff]
  %v124 = vshra.s32 %v91, 8
  %v125 = vand.u32 %v124, 15
  %v126 = vadd.s32 %v123, %v125
  %127 = vst [vmem:[%s122] sm:$0xff] %v126
  %s128 = scalar_lea.vmem %s3, 16
  %v129 = vld [vmem:[%s128] sm:$0xff]
  %v130 = vshra.s32 %v85, 8
  %v131 = vand.u32 %v130, 15
  %v132 = vadd.s32 %v129, %v131
  %133 = vst [vmem:[%s128] sm:$0xff] %v132
  %s134 = scalar_lea.vmem %s4, 16
  %v135 = vld [vmem:[%s134] sm:$0xff]
  %v136 = vshra.s32 %v89, 8
  %v137 = vand.u32 %v136, 15
  %v138 = vadd.s32 %v135, %v137
  %139 = vst [vmem:[%s134] sm:$0xff] %v138
  %s140 = scalar_lea.vmem %s2, 24
  %v141 = vld [vmem:[%s140] sm:$0xff]
  %v142 = vshra.s32 %v91, 12
  %v143 = vand.u32 %v142, 15
  %v144 = vadd.s32 %v141, %v143
  %145 = vst [vmem:[%s140] sm:$0xff] %v144
  %s146 = scalar_lea.vmem %s3, 24
  %v147 = vld [vmem:[%s146] sm:$0xff]
  %v148 = vshra.s32 %v85, 12
  %v149 = vand.u32 %v148, 15
  %v150 = vadd.s32 %v147, %v149
  %151 = vst [vmem:[%s146] sm:$0xff] %v150
  %s152 = scalar_lea.vmem %s4, 24
  %v153 = vld [vmem:[%s152] sm:$0xff]
  %v154 = vshra.s32 %v89, 12
  %v155 = vand.u32 %v154, 15
  %v156 = vadd.s32 %v153, %v155
  %157 = vst [vmem:[%s152] sm:$0xff] %v156
  %s158 = scalar_lea.vmem %s2, 32
  %v159 = vld [vmem:[%s158] sm:$0xff]
  %v160 = vshra.s32 %v91, 16
  %v161 = vand.u32 %v160, 15
  %v162 = vadd.s32 %v159, %v161
  %163 = vst [vmem:[%s158] sm:$0xff] %v162
  %s164 = scalar_lea.vmem %s3, 32
  %v165 = vld [vmem:[%s164] sm:$0xff]
  %v166 = vshra.s32 %v85, 16
  %v167 = vand.u32 %v166, 15
  %v168 = vadd.s32 %v165, %v167
  %169 = vst [vmem:[%s164] sm:$0xff] %v168
  %s170 = scalar_lea.vmem %s4, 32
  %v171 = vld [vmem:[%s170] sm:$0xff]
  %v172 = vshra.s32 %v89, 16
  %v173 = vand.u32 %v172, 15
  %v174 = vadd.s32 %v171, %v173
  %175 = vst [vmem:[%s170] sm:$0xff] %v174
  %s176 = scalar_lea.vmem %s2, 40
  %v177 = vld [vmem:[%s176] sm:$0xff]
  %v178 = vshra.s32 %v91, 20
  %v179 = vand.u32 %v178, 15
  %v180 = vadd.s32 %v177, %v179
  %181 = vst [vmem:[%s176] sm:$0xff] %v180
  %s182 = scalar_lea.vmem %s3, 40
  %v183 = vld [vmem:[%s182] sm:$0xff]
  %v184 = vshra.s32 %v85, 20
  %v185 = vand.u32 %v184, 15
  %v186 = vadd.s32 %v183, %v185
  %187 = vst [vmem:[%s182] sm:$0xff] %v186
  %s188 = scalar_lea.vmem %s4, 40
  %v189 = vld [vmem:[%s188] sm:$0xff]
  %v190 = vshra.s32 %v89, 20
  %v191 = vand.u32 %v190, 15
  %v192 = vadd.s32 %v189, %v191
  %193 = vst [vmem:[%s188] sm:$0xff] %v192
  %s194 = scalar_lea.vmem %s2, 48
  %v195 = vld [vmem:[%s194] sm:$0xff]
  %v196 = vshra.s32 %v91, 24
  %v197 = vand.u32 %v196, 15
  %v198 = vadd.s32 %v195, %v197
  %199 = vst [vmem:[%s194] sm:$0xff] %v198
  %s200 = scalar_lea.vmem %s3, 48
  %v201 = vld [vmem:[%s200] sm:$0xff]
  %v202 = vshra.s32 %v85, 24
  %v203 = vand.u32 %v202, 15
  %v204 = vadd.s32 %v201, %v203
  %205 = vst [vmem:[%s200] sm:$0xff] %v204
  %s206 = scalar_lea.vmem %s4, 48
  %v207 = vld [vmem:[%s206] sm:$0xff]
  %v208 = vshra.s32 %v89, 24
  %v209 = vand.u32 %v208, 15
  %v210 = vadd.s32 %v207, %v209
  %211 = vst [vmem:[%s206] sm:$0xff] %v210
  %s212 = scalar_lea.vmem %s2, 56
  %v213 = vld [vmem:[%s212] sm:$0xff]
  %v214 = vshra.s32 %v91, 28
  %v215 = vand.u32 %v214, 15
  %v216 = vadd.s32 %v213, %v215
  %217 = vst [vmem:[%s212] sm:$0xff] %v216
  %s218 = scalar_lea.vmem %s3, 56
  %v219 = vld [vmem:[%s218] sm:$0xff]
  %v220 = vshra.s32 %v85, 28
  %v221 = vand.u32 %v220, 15
  %v222 = vadd.s32 %v219, %v221
  %223 = vst [vmem:[%s218] sm:$0xff] %v222
  %s224 = scalar_lea.vmem %s4, 56
  %v225 = vld [vmem:[%s224] sm:$0xff]
  %v226 = vshra.s32 %v89, 28
  %v227 = vand.u32 %v226, 15
  %v228 = vadd.s32 %v225, %v227
  %229 = vst [vmem:[%s224] sm:$0xff] %v228
  // Predicated region
  $region14: #{multiclass_dice_score.1} parent=0 // pred_check
    _
  $region15: #{multiclass_dice_score.1} parent=0 // pred_check_branch
    %231 = sbr.rel (0) target = $region17
  $region16: #{multiclass_dice_score.1} parent=0 // pred_region
    _
  $region17: #{multiclass_dice_score.1} parent=0 // pred_fallthru
    _
  // Predicated region
  $region18: #{multiclass_dice_score.1} parent=0 // pred_check
    _
  $region19: #{multiclass_dice_score.1} parent=0 // pred_check_branch
    %233 = sbr.rel (0) target = $region21
  $region20: #{multiclass_dice_score.1} parent=0 // pred_region
    _
  $region21: #{multiclass_dice_score.1} parent=0 // pred_fallthru
    _
  // Predicated region
  $region22: #{multiclass_dice_score.1} parent=0 // pred_check
    _
  $region23: #{multiclass_dice_score.1} parent=0 // pred_check_branch
    %235 = sbr.rel (0) target = $region25
  $region24: #{multiclass_dice_score.1} parent=0 // pred_region
    _
  $region25: #{multiclass_dice_score.1} parent=0 // pred_fallthru
    _
  // Predicated region
  $region26: #{multiclass_dice_score.1} parent=0 // pred_check
    _
  $region27: #{multiclass_dice_score.1} parent=0 // pred_check_branch
    %237 = sbr.rel (0) target = $region29
  $region28: #{multiclass_dice_score.1} parent=0 // pred_region
    _
  $region29: #{multiclass_dice_score.1} parent=0 // pred_fallthru
    _
  // Predicated region
  $region30: #{multiclass_dice_score.1} parent=0 // pred_check
    _
  $region31: #{multiclass_dice_score.1} parent=0 // pred_check_branch
    %239 = sbr.rel (0) target = $region33
  $region32: #{multiclass_dice_score.1} parent=0 // pred_region
    _
  $region33: #{multiclass_dice_score.1} parent=0 // pred_fallthru
    _
  // Predicated region
  $region34: #{multiclass_dice_score.1} parent=0 // pred_check
    _
  $region35: #{multiclass_dice_score.1} parent=0 // pred_check_branch
    %241 = sbr.rel (0) target = $region37
  $region36: #{multiclass_dice_score.1} parent=0 // pred_region
    _
  $region37: #{multiclass_dice_score.1} parent=0 // pred_fallthru
    _

</llo_original>
